<compile_context>
chip_gen: v7x
topology: tpu7x:2x2x1
jax: 0.10.0
libtpu: 0.0.40
codegen_flags: <defaults>
</compile_context>

<pallas_src>
import jax
import jax.numpy as jnp
from jax.experimental import pallas as pl
from jax.experimental.pallas import tpu as pltpu


def _make_projection_kernel(finalize_normalize):
    def kernel(x_hbm, w1_ref, gb_ref, w2_ref, o_ref, x_vmem, dma_sem):
        k = pl.program_id(1)

        @pl.when(k == 0)
        def _prologue():
            # Grid-invariant activations: one manual, single-buffered HBM->VMEM copy.
            cp = pltpu.make_async_copy(x_hbm, x_vmem, dma_sem)
            cp.start()
            cp.wait()
            o_ref[...] = jnp.zeros_like(o_ref)

        # ---- Linear 1 for this hidden tile (bias dropped: a Linear bias feeding a
        #      training-mode BatchNorm cancels exactly through mean subtraction). ----
        h = jnp.dot(x_vmem[...], w1_ref[...], preferred_element_type=jnp.float32)

        # ---- BatchNorm1d (batch stats) + affine + ReLU fused into one scale/shift:
        #      a = inv_std * gamma, c = beta - mean * a, h = max(h * a + c, 0). ----
        inv_b = 1.0 / h.shape[0]
        mean = jnp.sum(h, axis=0, keepdims=True) * inv_b
        var = jnp.maximum(jnp.sum(h * h, axis=0, keepdims=True) * inv_b - mean * mean,
                          0.0)
        a = jax.lax.rsqrt(var + 1e-5) * gb_ref[0:1, :]
        c = gb_ref[1:2, :] - mean * a
        h = jnp.maximum(h * a + c, 0.0)

        # ---- Linear 2 (no bias): accumulate the partial product directly into the
        #      resident f32 output block. ----
        o_ref[...] += jnp.dot(h.astype(jnp.bfloat16), w2_ref[...],
                              preferred_element_type=jnp.float32)

        if finalize_normalize:
            @pl.when(k == pl.num_programs(1) - 1)
            def _finalize():
                z = o_ref[...]
                sumsq = jnp.sum(z * z, axis=1, keepdims=True)
                # z * rsqrt(max(sumsq, 1e-24)) == z / max(||z||_2, 1e-12) (torch eps)
                o_ref[...] = z * jax.lax.rsqrt(jnp.maximum(sumsq, 1e-24))

    return kernel


def _combine_normalize_kernel(p_ref, o_ref):
    # Sum the per-core-split partial products, then L2-normalize each row.
    z = jnp.sum(p_ref[...], axis=0)
    sumsq = jnp.sum(z * z, axis=1, keepdims=True)
    o_ref[...] = z * jax.lax.rsqrt(jnp.maximum(sumsq, 1e-24))


def _vmem_capacity_bytes():
    try:
        return int(pltpu.get_tpu_info().vmem_capacity_bytes)
    except Exception:
        return 64 * 1024 * 1024  # conservative fallback (v7x per-TC VMEM)


def _pick_hidden_tile(B, D_in, D_h, D_out, vmem_cap):
    """Largest hidden tile (preferring multiples of 256 for the 256-wide MXU on
    v6e/v7x) whose working set fits ~75% of this generation's VMEM."""
    budget = int(vmem_cap * 0.75)
    fixed = B * D_in * 2 + 2 * B * D_out * 4          # resident bf16 x + f32 out block
    candidates = [c for c in (1024, 512, 256, 128) if D_h % c == 0]
    if not candidates:
        return D_h
    for th in candidates:
        per_tile = (2 * D_in * th * 2                 # double-buffered bf16 w1 tile
                    + 2 * th * D_out * 2              # double-buffered bf16 w2 tile
                    + 2 * 2 * th * 4                  # double-buffered packed gamma/beta
                    + B * th * 6)                     # f32 h intermediate + bf16 copy
        if fixed + per_tile <= budget:
            return th
    return candidates[-1]


def projection_forward(x, w1, b1, gamma, beta, w2, *, th=None, num_core_splits=1):
    """x: (B, D_in); w1: (D_in, D_h); b1/gamma/beta: (D_h,); w2: (D_h, D_out).

    `b1` is accepted for parity with nn.Linear(bias=True) but is algebraically a
    no-op through training-mode BatchNorm1d, so it is not sent to the kernel.
    `num_core_splits=2` splits the hidden-tile range over a leading "parallel" grid
    axis (use on v7x to occupy both TensorCores); partials are combined in a tiny
    epilogue kernel.
    """
    del b1  # cancels exactly through the batch-mean subtraction in BatchNorm

    B, D_in = x.shape
    D_h = w1.shape[1]
    D_out = w2.shape[1]
    vmem_cap = _vmem_capacity_bytes()

    if th is None:
        th = _pick_hidden_tile(B, D_in, D_h, D_out, vmem_cap)
        # Keep the hidden-tile count divisible by the core split.
        while (num_core_splits > 1 and (D_h // th) % num_core_splits != 0
               and th % 2 == 0 and D_h % (th // 2) == 0):
            th //= 2
    assert D_h % th == 0, "hidden dim must be divisible by the hidden tile size"
    n_th = D_h // th
    assert n_th % num_core_splits == 0, "tile count must divide by num_core_splits"
    n_k = n_th // num_core_splits

    # bf16 MXU operands (halved HBM/VMEM traffic, native MXU rate); f32 elsewhere.
    x_bf = x.astype(jnp.bfloat16)
    w1_bf = w1.astype(jnp.bfloat16)
    w2_bf = w2.astype(jnp.bfloat16)
    # Pack [gamma; beta] -> one small per-step DMA instead of three.
    gb = jnp.stack([jnp.asarray(gamma, jnp.float32),
                    jnp.asarray(beta, jnp.float32)], axis=0)          # (2, D_h)

    # Explicit VMEM budget sized from the real footprint (with headroom).
    vmem_needed = (B * D_in * 2                    # single-buffered x
                   + 2 * D_in * th * 2             # w1 tiles
                   + 2 * th * D_out * 2            # w2 tiles
                   + 2 * 2 * th * 4                # gamma/beta tiles
                   + 2 * B * D_out * 4             # output block
                   + B * th * 6)                   # f32 h intermediate + bf16 copy
    vmem_limit = int(min(max(vmem_needed * 3 // 2 + (4 << 20), 32 << 20),
                         vmem_cap - (2 << 20)))

    cost = pl.CostEstimate(
        flops=2 * B * D_in * D_h + 2 * B * D_h * D_out + 8 * B * D_h,
        transcendentals=D_h + B,
        bytes_accessed=(x_bf.size * 2 + w1_bf.size * 2 + w2_bf.size * 2
                        + gb.size * 4 + num_core_splits * B * D_out * 4),
    )

    kernel = _make_projection_kernel(finalize_normalize=(num_core_splits == 1))
    partials = pl.pallas_call(
        kernel,
        out_shape=jax.ShapeDtypeStruct((num_core_splits, B, D_out), jnp.float32),
        grid=(num_core_splits, n_k),
        in_specs=[
            pl.BlockSpec(memory_space=pl.ANY),                          # x: raw HBM
            pl.BlockSpec((D_in, th), lambda c, k: (0, c * n_k + k)),    # w1 column tile
            pl.BlockSpec((2, th), lambda c, k: (0, c * n_k + k)),       # [gamma; beta]
            pl.BlockSpec((th, D_out), lambda c, k: (c * n_k + k, 0)),   # w2 row tile
        ],
        out_specs=pl.BlockSpec((None, B, D_out), lambda c, k: (c, 0, 0)),
        scratch_shapes=[
            pltpu.VMEM((B, D_in), jnp.bfloat16),    # resident x (single-buffered)
            pltpu.SemaphoreType.DMA(()),
        ],
        compiler_params=pltpu.CompilerParams(
            dimension_semantics=("parallel", "arbitrary"),
            vmem_limit_bytes=vmem_limit,
        ),
        cost_estimate=cost,
    )(x_bf, w1_bf, gb, w2_bf)

    if num_core_splits == 1:
        return partials.reshape(B, D_out)   # already L2-normalized in-kernel

    # Cross-split combine + L2-normalize (tiny epilogue kernel).
    return pl.pallas_call(
        _combine_normalize_kernel,
        out_shape=jax.ShapeDtypeStruct((B, D_out), jnp.float32),
        grid=(1,),
        in_specs=[pl.BlockSpec((num_core_splits, B, D_out), lambda i: (0, 0, 0))],
        out_specs=pl.BlockSpec((B, D_out), lambda i: (0, 0)),
    )(partials)


if __name__ == "__main__":
    # Small shapes consistent with the module (defaults 2048/2048/128 shrunk),
    # chosen so the hidden-tile grid has >1 step and the output stays lane-dense.
    B, D_in, D_h, D_out = 8, 256, 512, 128

    key = jax.random.PRNGKey(0)
    kx, kw1, kb1, kg, kb, kw2 = jax.random.split(key, 6)

    x = jax.random.normal(kx, (B, D_in), dtype=jnp.float32)

    # PyTorch-style uniform init, weights pre-transposed to (in, out).
    bound1 = 1.0 / (D_in ** 0.5)
    w1 = jax.random.uniform(kw1, (D_in, D_h), minval=-bound1, maxval=bound1,
                            dtype=jnp.float32)
    b1 = jax.random.uniform(kb1, (D_h,), minval=-bound1, maxval=bound1,
                            dtype=jnp.float32)

    # Non-trivial BatchNorm affine parameters to exercise the fused scale/shift.
    gamma = 1.0 + 0.1 * jax.random.normal(kg, (D_h,), dtype=jnp.float32)
    beta = 0.1 * jax.random.normal(kb, (D_h,), dtype=jnp.float32)

    bound2 = 1.0 / (D_h ** 0.5)
    w2 = jax.random.uniform(kw2, (D_h, D_out), minval=-bound2, maxval=bound2,
                            dtype=jnp.float32)

    # Pure-JAX reference (keeps the Linear-1 bias -- it cancels through BN) with the
    # kernel's bf16-operand / f32-accumulate numerics.
    def reference(x, w1, b1, gamma, beta, w2):
        xb = x.astype(jnp.bfloat16).astype(jnp.float32)
        w1b = w1.astype(jnp.bfloat16).astype(jnp.float32)
        w2b = w2.astype(jnp.bfloat16).astype(jnp.float32)
        h = xb @ w1b + b1[None, :]
        mean = jnp.mean(h, axis=0, keepdims=True)
        var = jnp.mean((h - mean) ** 2, axis=0, keepdims=True)
        h = (h - mean) * jax.lax.rsqrt(var + 1e-5) * gamma[None, :] + beta[None, :]
        h = jnp.maximum(h, 0.0)
        z = h.astype(jnp.bfloat16).astype(jnp.float32) @ w2b
        n = jnp.sqrt(jnp.sum(z * z, axis=1, keepdims=True))
        return z / jnp.maximum(n, 1e-12)

    ref = reference(x, w1, b1, gamma, beta, w2)

    outs = {
        "auto_tile": projection_forward(x, w1, b1, gamma, beta, w2),
        "multi_tile": projection_forward(x, w1, b1, gamma, beta, w2, th=128),
        "core_split": projection_forward(x, w1, b1, gamma, beta, w2, th=128,
                                         num_core_splits=2),
    }
    outs = jax.block_until_ready(outs)

    for name, out in outs.items():
        assert out.shape == (B, D_out), name
        row_norms = jnp.sqrt(jnp.sum(out * out, axis=1))
        assert bool(jnp.all(jnp.abs(row_norms - 1.0) < 1e-4)), name
        assert bool(jnp.max(jnp.abs(out - ref)) < 5e-3), name

    print("KERNEL_OK")
</pallas_src>

<mosaic_0001>
module attributes {stable_mosaic.version = 11 : i64} {
  func.func @kernel(%arg0: i32, %arg1: i32, %arg2: memref<8x256xbf16, #tpu.memory_space<any>>, %arg3: memref<256x512xbf16, #tpu.memory_space<vmem>>, %arg4: memref<2x512xf32, #tpu.memory_space<vmem>>, %arg5: memref<512x128xbf16, #tpu.memory_space<vmem>>, %arg6: memref<1x8x128xf32, #tpu.memory_space<vmem>>, %arg7: memref<8x256xbf16, #tpu.memory_space<vmem>>, %arg8: memref<!tpu.dma_semaphore, #tpu.memory_space<semaphore_mem>>) attributes {dimension_semantics = [#tpu.dimension_semantics<parallel>, #tpu.dimension_semantics<arbitrary>], iteration_bounds = array<i64: 1, 1>, scalar_prefetch = 0 : i64, scratch_operands = 2 : i64, tpu.core_type = #tpu.core_type<tc>, window_params = [{}, {transform_indices = @transform_1, window_bounds = array<i64: 256, 512>}, {transform_indices = @transform_2, window_bounds = array<i64: 2, 512>}, {transform_indices = @transform_3, window_bounds = array<i64: 512, 128>}, {transform_indices = @transform_4, window_bounds = array<i64: 1, 8, 128>}]} {
    %c0_i32 = arith.constant 0 : i32
    %0 = arith.cmpi eq, %arg1, %c0_i32 : i32
    %1 = arith.extui %0 : i1 to i32
    %c0_i32_0 = arith.constant 0 : i32
    %2 = arith.cmpi ne, %1, %c0_i32_0 : i32
    scf.if %2 {
      tpu.enqueue_dma source(%arg2 : memref<8x256xbf16, #tpu.memory_space<any>>) target(%arg7 : memref<8x256xbf16, #tpu.memory_space<vmem>>) target_semaphore(%arg8 : memref<!tpu.dma_semaphore, #tpu.memory_space<semaphore_mem>>)
      tpu.wait_dma2 semaphore(%arg8 : memref<!tpu.dma_semaphore, #tpu.memory_space<semaphore_mem>>) src(%arg2 : memref<8x256xbf16, #tpu.memory_space<any>>) dst(%arg7 : memref<8x256xbf16, #tpu.memory_space<vmem>>)
      %cst_25 = arith.constant 0.000000e+00 : f32
      %45 = vector.broadcast %cst_25 : f32 to vector<8x128xf32>
      %c0_26 = arith.constant 0 : index
      %c0_27 = arith.constant 0 : index
      %c0_28 = arith.constant 0 : index
      %46 = vector.load %arg6[%c0_26, %c0_27, %c0_28] : memref<1x8x128xf32, #tpu.memory_space<vmem>>, vector<1x8x128xf32>
      %47 = vector.shape_cast %46 : vector<1x8x128xf32> to vector<8x128xf32>
      %48 = vector.shape_cast %45 : vector<8x128xf32> to vector<1x8x128xf32>
      tpu.vector_store %arg6[%c0_26, %c0_27, %c0_28], %48 {strides = array<i32>} : memref<1x8x128xf32, #tpu.memory_space<vmem>>, vector<1x8x128xf32>,
    } else {
    }
    %c0 = arith.constant 0 : index
    %c0_1 = arith.constant 0 : index
    %3 = vector.load %arg7[%c0, %c0_1] : memref<8x256xbf16, #tpu.memory_space<vmem>>, vector<8x256xbf16>
    %c0_2 = arith.constant 0 : index
    %c0_3 = arith.constant 0 : index
    %4 = vector.load %arg3[%c0_2, %c0_3] : memref<256x512xbf16, #tpu.memory_space<vmem>>, vector<256x512xbf16>
    %cst = arith.constant dense<0.000000e+00> : vector<8x512xf32>
    %5 = tpu.matmul %3, %4, %cst {dimension_numbers = #tpu.dot_dimension_numbers<[1], [0], [0], [1], [0, 0, 1, 1], [], []>} : vector<8x256xbf16>, vector<256x512xbf16>, vector<8x512xf32> -> vector<8x512xf32>
    %cst_4 = arith.constant dense<0.000000e+00> : vector<512xf32>
    %6 = vector.multi_reduction <add>, %5, %cst_4 [0] : vector<8x512xf32> to vector<512xf32>
    %7 = vector.shape_cast %6 : vector<512xf32> to vector<1x512xf32>
    %cst_5 = arith.constant 1.250000e-01 : f32
    %8 = vector.broadcast %cst_5 : f32 to vector<1x512xf32>
    %9 = arith.mulf %7, %8 : vector<1x512xf32>
    %10 = arith.mulf %5, %5 : vector<8x512xf32>
    %cst_6 = arith.constant dense<0.000000e+00> : vector<512xf32>
    %11 = vector.multi_reduction <add>, %10, %cst_6 [0] : vector<8x512xf32> to vector<512xf32>
    %12 = vector.shape_cast %11 : vector<512xf32> to vector<1x512xf32>
    %cst_7 = arith.constant 1.250000e-01 : f32
    %13 = vector.broadcast %cst_7 : f32 to vector<1x512xf32>
    %14 = arith.mulf %12, %13 : vector<1x512xf32>
    %15 = arith.mulf %9, %9 : vector<1x512xf32>
    %16 = arith.subf %14, %15 : vector<1x512xf32>
    %cst_8 = arith.constant 0.000000e+00 : f32
    %17 = vector.broadcast %cst_8 : f32 to vector<1x512xf32>
    %18 = arith.maximumf %16, %17 : vector<1x512xf32>
    %cst_9 = arith.constant 9.99999974E-6 : f32
    %19 = vector.broadcast %cst_9 : f32 to vector<1x512xf32>
    %20 = arith.addf %18, %19 : vector<1x512xf32>
    %21 = math.rsqrt %20 : vector<1x512xf32>
    %c0_10 = arith.constant 0 : index
    %c0_11 = arith.constant 0 : index
    %22 = vector.load %arg4[%c0_10, %c0_11] : memref<2x512xf32, #tpu.memory_space<vmem>>, vector<1x512xf32>
    %23 = arith.mulf %21, %22 : vector<1x512xf32>
    %c1 = arith.constant 1 : index
    %c0_12 = arith.constant 0 : index
    %24 = vector.load %arg4[%c1, %c0_12] : memref<2x512xf32, #tpu.memory_space<vmem>>, vector<1x512xf32>
    %25 = arith.mulf %9, %23 : vector<1x512xf32>
    %26 = arith.subf %24, %25 : vector<1x512xf32>
    %27 = vector.broadcast %23 : vector<1x512xf32> to vector<8x512xf32>
    %28 = arith.mulf %5, %27 : vector<8x512xf32>
    %29 = vector.broadcast %26 : vector<1x512xf32> to vector<8x512xf32>
    %30 = arith.addf %28, %29 : vector<8x512xf32>
    %cst_13 = arith.constant 0.000000e+00 : f32
    %31 = vector.broadcast %cst_13 : f32 to vector<8x512xf32>
    %32 = arith.maximumf %30, %31 : vector<8x512xf32>
    %c0_14 = arith.constant 0 : index
    %c0_15 = arith.constant 0 : index
    %c0_16 = arith.constant 0 : index
    %33 = vector.load %arg6[%c0_14, %c0_15, %c0_16] : memref<1x8x128xf32, #tpu.memory_space<vmem>>, vector<1x8x128xf32>
    %34 = vector.shape_cast %33 : vector<1x8x128xf32> to vector<8x128xf32>
    %35 = arith.truncf %32 : vector<8x512xf32> to vector<8x512xbf16>
    %c0_17 = arith.constant 0 : index
    %c0_18 = arith.constant 0 : index
    %36 = vector.load %arg5[%c0_17, %c0_18] : memref<512x128xbf16, #tpu.memory_space<vmem>>, vector<512x128xbf16>
    %cst_19 = arith.constant dense<0.000000e+00> : vector<8x128xf32>
    %37 = tpu.matmul %35, %36, %cst_19 {dimension_numbers = #tpu.dot_dimension_numbers<[1], [0], [0], [1], [0, 0, 1, 1], [], []>} : vector<8x512xbf16>, vector<512x128xbf16>, vector<8x128xf32> -> vector<8x128xf32>
    %38 = arith.addf %34, %37 : vector<8x128xf32>
    %c0_20 = arith.constant 0 : index
    %c0_21 = arith.constant 0 : index
    %c0_22 = arith.constant 0 : index
    %39 = vector.load %arg6[%c0_20, %c0_21, %c0_22] : memref<1x8x128xf32, #tpu.memory_space<vmem>>, vector<1x8x128xf32>
    %40 = vector.shape_cast %39 : vector<1x8x128xf32> to vector<8x128xf32>
    %41 = vector.shape_cast %38 : vector<8x128xf32> to vector<1x8x128xf32>
    tpu.vector_store %arg6[%c0_20, %c0_21, %c0_22], %41 {strides = array<i32>} : memref<1x8x128xf32, #tpu.memory_space<vmem>>, vector<1x8x128xf32>,
    %c0_i32_23 = arith.constant 0 : i32
    %42 = arith.cmpi eq, %arg1, %c0_i32_23 : i32
    %43 = arith.extui %42 : i1 to i32
    %c0_i32_24 = arith.constant 0 : i32
    %44 = arith.cmpi ne, %43, %c0_i32_24 : i32
    scf.if %44 {
      %c0_25 = arith.constant 0 : index
      %c0_26 = arith.constant 0 : index
      %c0_27 = arith.constant 0 : index
      %45 = vector.load %arg6[%c0_25, %c0_26, %c0_27] : memref<1x8x128xf32, #tpu.memory_space<vmem>>, vector<1x8x128xf32>
      %46 = vector.shape_cast %45 : vector<1x8x128xf32> to vector<8x128xf32>
      %47 = arith.mulf %46, %46 : vector<8x128xf32>
      %cst_28 = arith.constant dense<0.000000e+00> : vector<8xf32>
      %48 = vector.multi_reduction <add>, %47, %cst_28 [1] : vector<8x128xf32> to vector<8xf32>
      %49 = vector.shape_cast %48 : vector<8xf32> to vector<8x1xf32>
      %cst_29 = arith.constant 1.000000e-24 : f32
      %50 = vector.broadcast %cst_29 : f32 to vector<8x1xf32>
      %51 = arith.maximumf %49, %50 : vector<8x1xf32>
      %52 = math.rsqrt %51 : vector<8x1xf32>
      %53 = vector.broadcast %52 : vector<8x1xf32> to vector<8x128xf32>
      %54 = arith.mulf %46, %53 : vector<8x128xf32>
      %c0_30 = arith.constant 0 : index
      %c0_31 = arith.constant 0 : index
      %c0_32 = arith.constant 0 : index
      %55 = vector.load %arg6[%c0_30, %c0_31, %c0_32] : memref<1x8x128xf32, #tpu.memory_space<vmem>>, vector<1x8x128xf32>
      %56 = vector.shape_cast %55 : vector<1x8x128xf32> to vector<8x128xf32>
      %57 = vector.shape_cast %54 : vector<8x128xf32> to vector<1x8x128xf32>
      tpu.vector_store %arg6[%c0_30, %c0_31, %c0_32], %57 {strides = array<i32>} : memref<1x8x128xf32, #tpu.memory_space<vmem>>, vector<1x8x128xf32>,
    } else {
    }
    return
  }
  func.func @transform_1(%arg0: i32, %arg1: i32) -> (i32, i32) {
    %c1_i32 = arith.constant 1 : i32
    %0 = arith.muli %arg0, %c1_i32 : i32
    %1 = arith.addi %0, %arg1 : i32
    %c0_i32 = arith.constant 0 : i32
    %c0_i32_0 = arith.constant 0 : i32
    return %c0_i32, %1 : i32, i32
  }
  func.func @transform_2(%arg0: i32, %arg1: i32) -> (i32, i32) {
    %c1_i32 = arith.constant 1 : i32
    %0 = arith.muli %arg0, %c1_i32 : i32
    %1 = arith.addi %0, %arg1 : i32
    %c0_i32 = arith.constant 0 : i32
    %c0_i32_0 = arith.constant 0 : i32
    return %c0_i32, %1 : i32, i32
  }
  func.func @transform_3(%arg0: i32, %arg1: i32) -> (i32, i32) {
    %c1_i32 = arith.constant 1 : i32
    %0 = arith.muli %arg0, %c1_i32 : i32
    %1 = arith.addi %0, %arg1 : i32
    %c0_i32 = arith.constant 0 : i32
    %c0_i32_0 = arith.constant 0 : i32
    return %1, %c0_i32 : i32, i32
  }
  func.func @transform_4(%arg0: i32, %arg1: i32) -> (i32, i32, i32) {
    %c0_i32 = arith.constant 0 : i32
    %c0_i32_0 = arith.constant 0 : i32
    %c0_i32_1 = arith.constant 0 : i32
    return %arg0, %c0_i32, %c0_i32_0 : i32, i32, i32
  }
}

</mosaic_0001>

<llo_original>
// kernel: tpu_custom_call.1
$region0: #{tpu_custom_call.1}
  #allocation0 [shape = 'u32[]', space=smem, size = 0x4, offset = 0x4, fixed_abs, tag = 'smem constant byte address 0x4 - core index']
  #allocation1 [shape = 'u32[144,128]{1,0:T(1,128)}', space=vmem, size = 0x12000, scoped, tag = 'internal scratch']
  #allocation2 [shape = 'bf16[8,256]{1,0:T(8,128)(2,1)}', space=vmem, size = 0x1000, scoped, tag = 'scratch operand']
  #allocation3 [shape = 's32[1]{0}', space=sflag, size = 0x4, scoped, tag = 'scratch operand']
  #allocation11 [shape = 's32[]', space=sflag, size = 0x4, offset = 0, fixed_abs, tag = 'sflag constant byte address 0x0 - dummy sync flag']
  #allocation12 [shape = 's32[]', space=sflag, size = 0x4, offset = 0, fixed_abs, tag = 'sflag constant byte address 0x0 - dummy sync flag']
  #allocation13 [shape = 'u32[]', space=smem, size = 0x4, offset = 0x44, fixed_abs, tag = 'smem constant byte address 0x44 - assertion arg 0']
  #allocation14 [shape = 'u32[]', space=smem, size = 0x4, offset = 0x48, fixed_abs, tag = 'smem constant byte address 0x48 - assertion arg 1']
  %s0 = inlined_call_operand.hbm [shape: bf16[8,256], index: 0, kind: input, shape index: {}]
  %s1 = inlined_call_operand.hbm [shape: bf16[256,512], index: 1, kind: input, shape index: {}]
  %s2 = inlined_call_operand.hbm [shape: f32[2,512], index: 2, kind: input, shape index: {}]
  %s3 = inlined_call_operand.hbm [shape: bf16[512,128], index: 3, kind: input, shape index: {}]
  %s4 = inlined_call_operand.hbm [shape: f32[1,8,128], index: 4, kind: output, shape index: {}]
  %s5 = sld [smem:[#allocation0]]
  $region46: #{tpu_custom_call.1} parent=0
    _
  %s7 = ssub.s32 1, %s5
  %s8 = scalar_select 0, %s7, %s5
  $region1: #{tpu_custom_call.1} parent=0
    #allocation4 [shape = 'u8[262144]{0}', space=vmem, size = 0x40000, scoped, tag = 'input window, operand 1, single buffered']
    #allocation5 [shape = 's32[1]{0}', space=sflag, size = 0x4, scoped, tag = 'scoped memory for tpu_custom_call.1']
    #allocation6 [shape = 's32[1]{0}', space=sflag, size = 0x4, scoped, tag = 'scoped memory for tpu_custom_call.1']
    #allocation7 [shape = 'u8[4096]{0}', space=vmem, size = 0x1000, scoped, tag = 'input window, operand 2, single buffered']
    #allocation8 [shape = 's32[1]{0}', space=sflag, size = 0x4, scoped, tag = 'scoped memory for tpu_custom_call.1']
    #allocation9 [shape = 'u8[131072]{0}', space=vmem, size = 0x20000, scoped, tag = 'input window, operand 3, single buffered']
    #allocation10 [shape = 'u8[4096]{0}', space=vmem, size = 0x1000, scoped, tag = 'output window, operand 0, single buffered']
    %9 = vsyncpa [#allocation5], 0
    %10 = vsyncpa [#allocation8], 0
    %11 = vsyncpa [#allocation6], 0
    // Predicated region
    $region2: #{tpu_custom_call.1} parent=1 // pred_check
      _
    $region3: #{tpu_custom_call.1} parent=1 // pred_check_branch
      %13 = sbr.rel (0) target = $region5
    $region4: #{tpu_custom_call.1} parent=1 // pred_region
      %s14 = sadd.s32 0, 0
      %s15 = smul.u32 4, %s14
      %s17 = ssub.s32 8192, 8192
      %18 = vsyncadd [#allocation5], %s17
      %s19 = smul.addr %s15, 64
      %s20 = scalar_lea.hbm %s1, %s19
      %s21 = sshll.u32 [#allocation4], 4
      %s22 = int_to_ptr.vmem [resolvable:$true] %s21
      %27 = dma.hbm_to_vmem [thread:$0]  %s20, 8192, %s22, [#allocation5], 256, 256, 16
    $region5: #{tpu_custom_call.1} parent=1 // pred_fallthru
      _
    // Predicated region
    $region6: #{tpu_custom_call.1} parent=1 // pred_check
      _
    $region7: #{tpu_custom_call.1} parent=1 // pred_check_branch
      %29 = sbr.rel (0) target = $region9
    $region8: #{tpu_custom_call.1} parent=1 // pred_region
      %s30 = sadd.s32 0, 0
      %s31 = smul.u32 4, %s30
      %s33 = ssub.s32 128, 128
      %34 = vsyncadd [#allocation8], %s33
      %s35 = smul.addr %s31, 32
      %s36 = scalar_lea.hbm %s2, %s35
      %s38 = sshll.u32 [#allocation7], 4
      %s39 = int_to_ptr.vmem [resolvable:$true] %s38
      %41 = dma.hbm_to_vmem [thread:$0]  %s36, 128, %s39, [#allocation8]
    $region9: #{tpu_custom_call.1} parent=1 // pred_fallthru
      _
    // Predicated region
    $region10: #{tpu_custom_call.1} parent=1 // pred_check
      _
    $region11: #{tpu_custom_call.1} parent=1 // pred_check_branch
      %43 = sbr.rel (0) target = $region13
    $region12: #{tpu_custom_call.1} parent=1 // pred_region
      %s44 = sadd.s32 0, 0
      %s45 = smul.u32 64, %s44
      %s47 = ssub.s32 4096, 4096
      %48 = vsyncadd [#allocation8], %s47
      %s49 = smul.addr %s45, 64
      %s50 = scalar_lea.hbm %s3, %s49
      %s51 = sshll.u32 [#allocation9], 4
      %s52 = int_to_ptr.vmem [resolvable:$true] %s51
      %57 = dma.hbm_to_vmem [thread:$0]  %s50, 4096, %s52, [#allocation8], 64, 64, 4
    $region13: #{tpu_custom_call.1} parent=1 // pred_fallthru
      _
    // Predicated region
    $region14: #{tpu_custom_call.1} parent=1 // pred_check
      _
    $region15: #{tpu_custom_call.1} parent=1 // pred_check_branch
      %59 = sbr.rel (0) target = $region17
    $region16: #{tpu_custom_call.1} parent=1 // pred_region
      %60 = dma.done [#allocation5], 8192
    $region17: #{tpu_custom_call.1} parent=1 // pred_fallthru
      _
    // Predicated region
    $region18: #{tpu_custom_call.1} parent=1 // pred_check
      _
    $region19: #{tpu_custom_call.1} parent=1 // pred_check_branch
      %62 = sbr.rel (0) target = $region21
    $region20: #{tpu_custom_call.1} parent=1 // pred_region
      %63 = dma.done [#allocation8], 128
    $region21: #{tpu_custom_call.1} parent=1 // pred_fallthru
      _
    // Predicated region
    $region22: #{tpu_custom_call.1} parent=1 // pred_check
      _
    $region23: #{tpu_custom_call.1} parent=1 // pred_check_branch
      %65 = sbr.rel (0) target = $region25
    $region24: #{tpu_custom_call.1} parent=1 // pred_region
      %66 = dma.done [#allocation8], 4096
    $region25: #{tpu_custom_call.1} parent=1 // pred_fallthru
      _
    %s67 = sadd.s32 0, 0
    %s68 = smul.u32 4, %s67
    %s69 = sadd.s32 0, 0
    %s70 = smul.u32 4, %s69
    %s71 = sadd.s32 0, 0
    %s72 = smul.u32 64, %s71
    %p74 = scmp.eq.s32.totalorder 0, 0
    // Predicated region
    $region26: #{tpu_custom_call.1} parent=1 // pred_check
      %p75 = pneg %p74
    $region27: #{tpu_custom_call.1} parent=1 // pred_check_branch
      %77 = sbr.rel (%p75) target = $region29
    $region28: #{tpu_custom_call.1} parent=1 // pred_region
      // Predicated region
      $region30: #{tpu_custom_call.1} parent=28 // pred_check
        _
      $region31: #{tpu_custom_call.1} parent=28 // pred_check_branch
        %79 = sbr.rel target = $region33
      $region32: #{tpu_custom_call.1} parent=28 // pred_region
        %80 = sst [smem:[#allocation13]] [#allocation12]
        %81 = sst [smem:[#allocation14]] [#allocation11]
      $region33: #{tpu_custom_call.1} parent=28 // pred_fallthru
        _
      %83 = shalt.err (0)
      %s85 = sshll.u32 [#allocation2], 4
      %s86 = int_to_ptr.vmem [resolvable:$true] %s85
      %88 = dma.hbm_to_vmem [thread:$0]  %s0, 128, %s86, [#allocation3]
      %s89 = smul.u32 4, 1
      %s90 = smul.u32 %s89, 2
      %s91 = sshll.u32 %s90, 4
      %92 = dma.done [#allocation3], %s91
      %93 = vst [vmem:[#allocation10] sm:$0xff] 0.0
    $region29: #{tpu_custom_call.1} parent=1 // pred_fallthru
      _
    %v94 = vld [vmem:[#allocation2] sm:$0xff]
    %v95 = vld [vmem:[#allocation4] sm:$0xff]
    %v96 = vld [vmem:[#allocation4 + $0x8] sm:$0xff]
    %v97 = vld [vmem:[#allocation4 + $0x10] sm:$0xff]
    %v98 = vld [vmem:[#allocation4 + $0x18] sm:$0xff]
    %v99 = vld [vmem:[#allocation4 + $0x20] sm:$0xff]
    %v100 = vld [vmem:[#allocation4 + $0x28] sm:$0xff]
    %v101 = vld [vmem:[#allocation4 + $0x30] sm:$0xff]
    %v102 = vld [vmem:[#allocation4 + $0x38] sm:$0xff]
    %v103 = vld [vmem:[#allocation4 + $0x40] sm:$0xff]
    %v104 = vld [vmem:[#allocation4 + $0x48] sm:$0xff]
    %v105 = vld [vmem:[#allocation4 + $0x50] sm:$0xff]
    %v106 = vld [vmem:[#allocation4 + $0x58] sm:$0xff]
    %v107 = vld [vmem:[#allocation4 + $0x60] sm:$0xff]
    %v108 = vld [vmem:[#allocation4 + $0x68] sm:$0xff]
    %v109 = vld [vmem:[#allocation4 + $0x70] sm:$0xff]
    %v110 = vld [vmem:[#allocation4 + $0x78] sm:$0xff]
    %v111 = vld [vmem:[#allocation4 + $0x80] sm:$0xff]
    %v112 = vld [vmem:[#allocation4 + $0x88] sm:$0xff]
    %v113 = vld [vmem:[#allocation4 + $0x90] sm:$0xff]
    %v114 = vld [vmem:[#allocation4 + $0x98] sm:$0xff]
    %v115 = vld [vmem:[#allocation4 + $0xa0] sm:$0xff]
    %v116 = vld [vmem:[#allocation4 + $0xa8] sm:$0xff]
    %v117 = vld [vmem:[#allocation4 + $0xb0] sm:$0xff]
    %v118 = vld [vmem:[#allocation4 + $0xb8] sm:$0xff]
    %v119 = vld [vmem:[#allocation4 + $0xc0] sm:$0xff]
    %v120 = vld [vmem:[#allocation4 + $0xc8] sm:$0xff]
    %v121 = vld [vmem:[#allocation4 + $0xd0] sm:$0xff]
    %v122 = vld [vmem:[#allocation4 + $0xd8] sm:$0xff]
    %v123 = vld [vmem:[#allocation4 + $0xe0] sm:$0xff]
    %v124 = vld [vmem:[#allocation4 + $0xe8] sm:$0xff]
    %v125 = vld [vmem:[#allocation4 + $0xf0] sm:$0xff]
    %v126 = vld [vmem:[#allocation4 + $0xf8] sm:$0xff]
    %v127 = vld [vmem:[#allocation4 + $0x100] sm:$0xff]
    %v128 = vld [vmem:[#allocation4 + $0x108] sm:$0xff]
    %v129 = vld [vmem:[#allocation4 + $0x110] sm:$0xff]
    %v130 = vld [vmem:[#allocation4 + $0x118] sm:$0xff]
    %v131 = vld [vmem:[#allocation4 + $0x120] sm:$0xff]
    %v132 = vld [vmem:[#allocation4 + $0x128] sm:$0xff]
    %v133 = vld [vmem:[#allocation4 + $0x130] sm:$0xff]
    %v134 = vld [vmem:[#allocation4 + $0x138] sm:$0xff]
    %v135 = vld [vmem:[#allocation4 + $0x140] sm:$0xff]
    %v136 = vld [vmem:[#allocation4 + $0x148] sm:$0xff]
    %v137 = vld [vmem:[#allocation4 + $0x150] sm:$0xff]
    %v138 = vld [vmem:[#allocation4 + $0x158] sm:$0xff]
    %v139 = vld [vmem:[#allocation4 + $0x160] sm:$0xff]
    %v140 = vld [vmem:[#allocation4 + $0x168] sm:$0xff]
    %v141 = vld [vmem:[#allocation4 + $0x170] sm:$0xff]
    %v142 = vld [vmem:[#allocation4 + $0x178] sm:$0xff]
    %v143 = vld [vmem:[#allocation4 + $0x180] sm:$0xff]
    %v144 = vld [vmem:[#allocation4 + $0x188] sm:$0xff]
    %v145 = vld [vmem:[#allocation4 + $0x190] sm:$0xff]
    %v146 = vld [vmem:[#allocation4 + $0x198] sm:$0xff]
    %v147 = vld [vmem:[#allocation4 + $0x1a0] sm:$0xff]
    %v148 = vld [vmem:[#allocation4 + $0x1a8] sm:$0xff]
    %v149 = vld [vmem:[#allocation4 + $0x1b0] sm:$0xff]
    %v150 = vld [vmem:[#allocation4 + $0x1b8] sm:$0xff]
    %v151 = vld [vmem:[#allocation4 + $0x1c0] sm:$0xff]
    %v152 = vld [vmem:[#allocation4 + $0x1c8] sm:$0xff]
    %v153 = vld [vmem:[#allocation4 + $0x1d0] sm:$0xff]
    %v154 = vld [vmem:[#allocation4 + $0x1d8] sm:$0xff]
    %v155 = vld [vmem:[#allocation4 + $0x1e0] sm:$0xff]
    %v156 = vld [vmem:[#allocation4 + $0x1e8] sm:$0xff]
    %v157 = vld [vmem:[#allocation4 + $0x1f0] sm:$0xff]
    %v158 = vld [vmem:[#allocation4 + $0x1f8] sm:$0xff]
    %v160 = vunpack.c.l.b16 %v94
    %v161 = vunpack.c.h.b16 %v94
    %v162 = vpack.c.b16 %v160, %v160
    %v163 = vpack.c.b16 %v161, %v161
    %v230 = vunpack.c.l.b16 %v95
    %v231 = vunpack.c.h.b16 %v95
    %v232 = vunpack.c.l.b16 %v96
    %v233 = vunpack.c.h.b16 %v96
    %v234 = vunpack.c.l.b16 %v97
    %v235 = vunpack.c.h.b16 %v97
    %v236 = vunpack.c.l.b16 %v98
    %v237 = vunpack.c.h.b16 %v98
    %v238 = vunpack.c.l.b16 %v99
    %v239 = vunpack.c.h.b16 %v99
    %v240 = vunpack.c.l.b16 %v100
    %v241 = vunpack.c.h.b16 %v100
    %v242 = vunpack.c.l.b16 %v101
    %v243 = vunpack.c.h.b16 %v101
    %v244 = vunpack.c.l.b16 %v102
    %v245 = vunpack.c.h.b16 %v102
    %v246 = vunpack.c.l.b16 %v103
    %v247 = vunpack.c.h.b16 %v103
    %v248 = vunpack.c.l.b16 %v104
    %v249 = vunpack.c.h.b16 %v104
    %v250 = vunpack.c.l.b16 %v105
    %v251 = vunpack.c.h.b16 %v105
    %v252 = vunpack.c.l.b16 %v106
    %v253 = vunpack.c.h.b16 %v106
    %v254 = vunpack.c.l.b16 %v107
    %v255 = vunpack.c.h.b16 %v107
    %v256 = vunpack.c.l.b16 %v108
    %v257 = vunpack.c.h.b16 %v108
    %v258 = vunpack.c.l.b16 %v109
    %v259 = vunpack.c.h.b16 %v109
    %v260 = vunpack.c.l.b16 %v110
    %v261 = vunpack.c.h.b16 %v110
    %v262 = vunpack.c.l.b16 %v111
    %v263 = vunpack.c.h.b16 %v111
    %v264 = vunpack.c.l.b16 %v112
    %v265 = vunpack.c.h.b16 %v112
    %v266 = vunpack.c.l.b16 %v113
    %v267 = vunpack.c.h.b16 %v113
    %v268 = vunpack.c.l.b16 %v114
    %v269 = vunpack.c.h.b16 %v114
    %v270 = vunpack.c.l.b16 %v115
    %v271 = vunpack.c.h.b16 %v115
    %v272 = vunpack.c.l.b16 %v116
    %v273 = vunpack.c.h.b16 %v116
    %v274 = vunpack.c.l.b16 %v117
    %v275 = vunpack.c.h.b16 %v117
    %v276 = vunpack.c.l.b16 %v118
    %v277 = vunpack.c.h.b16 %v118
    %v278 = vunpack.c.l.b16 %v119
    %v279 = vunpack.c.h.b16 %v119
    %v280 = vunpack.c.l.b16 %v120
    %v281 = vunpack.c.h.b16 %v120
    %v282 = vunpack.c.l.b16 %v121
    %v283 = vunpack.c.h.b16 %v121
    %v284 = vunpack.c.l.b16 %v122
    %v285 = vunpack.c.h.b16 %v122
    %v286 = vunpack.c.l.b16 %v123
    %v287 = vunpack.c.h.b16 %v123
    %v288 = vunpack.c.l.b16 %v124
    %v289 = vunpack.c.h.b16 %v124
    %v290 = vunpack.c.l.b16 %v125
    %v291 = vunpack.c.h.b16 %v125
    %v292 = vunpack.c.l.b16 %v126
    %v293 = vunpack.c.h.b16 %v126
    %v294 = vunpack.c.l.b16 %v127
    %v295 = vunpack.c.h.b16 %v127
    %v296 = vunpack.c.l.b16 %v128
    %v297 = vunpack.c.h.b16 %v128
    %v298 = vunpack.c.l.b16 %v129
    %v299 = vunpack.c.h.b16 %v129
    %v300 = vunpack.c.l.b16 %v130
    %v301 = vunpack.c.h.b16 %v130
    %v302 = vunpack.c.l.b16 %v131
    %v303 = vunpack.c.h.b16 %v131
    %v304 = vunpack.c.l.b16 %v132
    %v305 = vunpack.c.h.b16 %v132
    %v306 = vunpack.c.l.b16 %v133
    %v307 = vunpack.c.h.b16 %v133
    %v308 = vunpack.c.l.b16 %v134
    %v309 = vunpack.c.h.b16 %v134
    %v310 = vunpack.c.l.b16 %v135
    %v311 = vunpack.c.h.b16 %v135
    %v312 = vunpack.c.l.b16 %v136
    %v313 = vunpack.c.h.b16 %v136
    %v314 = vunpack.c.l.b16 %v137
    %v315 = vunpack.c.h.b16 %v137
    %v316 = vunpack.c.l.b16 %v138
    %v317 = vunpack.c.h.b16 %v138
    %v318 = vunpack.c.l.b16 %v139
    %v319 = vunpack.c.h.b16 %v139
    %v320 = vunpack.c.l.b16 %v140
    %v321 = vunpack.c.h.b16 %v140
    %v322 = vunpack.c.l.b16 %v141
    %v323 = vunpack.c.h.b16 %v141
    %v324 = vunpack.c.l.b16 %v142
    %v325 = vunpack.c.h.b16 %v142
    %v326 = vunpack.c.l.b16 %v143
    %v327 = vunpack.c.h.b16 %v143
    %v328 = vunpack.c.l.b16 %v144
    %v329 = vunpack.c.h.b16 %v144
    %v330 = vunpack.c.l.b16 %v145
    %v331 = vunpack.c.h.b16 %v145
    %v332 = vunpack.c.l.b16 %v146
    %v333 = vunpack.c.h.b16 %v146
    %v334 = vunpack.c.l.b16 %v147
    %v335 = vunpack.c.h.b16 %v147
    %v336 = vunpack.c.l.b16 %v148
    %v337 = vunpack.c.h.b16 %v148
    %v338 = vunpack.c.l.b16 %v149
    %v339 = vunpack.c.h.b16 %v149
    %v340 = vunpack.c.l.b16 %v150
    %v341 = vunpack.c.h.b16 %v150
    %v342 = vunpack.c.l.b16 %v151
    %v343 = vunpack.c.h.b16 %v151
    %v344 = vunpack.c.l.b16 %v152
    %v345 = vunpack.c.h.b16 %v152
    %v346 = vunpack.c.l.b16 %v153
    %v347 = vunpack.c.h.b16 %v153
    %v348 = vunpack.c.l.b16 %v154
    %v349 = vunpack.c.h.b16 %v154
    %v350 = vunpack.c.l.b16 %v155
    %v351 = vunpack.c.h.b16 %v155
    %v352 = vunpack.c.l.b16 %v156
    %v353 = vunpack.c.h.b16 %v156
    %v354 = vunpack.c.l.b16 %v157
    %v355 = vunpack.c.h.b16 %v157
    %v356 = vunpack.c.l.b16 %v158
    %v357 = vunpack.c.h.b16 %v158
    %v358 = vpack.c.b16 %v234, %v230
    %v359 = vpack.c.b16 %v235, %v231
    %v360 = vpack.c.b16 %v236, %v232
    %v361 = vpack.c.b16 %v237, %v233
    %v362 = vpack.c.b16 %v242, %v238
    %v363 = vpack.c.b16 %v243, %v239
    %v364 = vpack.c.b16 %v244, %v240
    %v365 = vpack.c.b16 %v245, %v241
    %v366 = vpack.c.b16 %v250, %v246
    %v367 = vpack.c.b16 %v251, %v247
    %v368 = vpack.c.b16 %v252, %v248
    %v369 = vpack.c.b16 %v253, %v249
    %v370 = vpack.c.b16 %v258, %v254
    %v371 = vpack.c.b16 %v259, %v255
    %v372 = vpack.c.b16 %v260, %v256
    %v373 = vpack.c.b16 %v261, %v257
    %v374 = vpack.c.b16 %v266, %v262
    %v375 = vpack.c.b16 %v267, %v263
    %v376 = vpack.c.b16 %v268, %v264
    %v377 = vpack.c.b16 %v269, %v265
    %v378 = vpack.c.b16 %v274, %v270
    %v379 = vpack.c.b16 %v275, %v271
    %v380 = vpack.c.b16 %v276, %v272
    %v381 = vpack.c.b16 %v277, %v273
    %v382 = vpack.c.b16 %v282, %v278
    %v383 = vpack.c.b16 %v283, %v279
    %v384 = vpack.c.b16 %v284, %v280
    %v385 = vpack.c.b16 %v285, %v281
    %v386 = vpack.c.b16 %v290, %v286
    %v387 = vpack.c.b16 %v291, %v287
    %v388 = vpack.c.b16 %v292, %v288
    %v389 = vpack.c.b16 %v293, %v289
    %v390 = vpack.c.b16 %v298, %v294
    %v391 = vpack.c.b16 %v299, %v295
    %v392 = vpack.c.b16 %v300, %v296
    %v393 = vpack.c.b16 %v301, %v297
    %v394 = vpack.c.b16 %v306, %v302
    %v395 = vpack.c.b16 %v307, %v303
    %v396 = vpack.c.b16 %v308, %v304
    %v397 = vpack.c.b16 %v309, %v305
    %v398 = vpack.c.b16 %v314, %v310
    %v399 = vpack.c.b16 %v315, %v311
    %v400 = vpack.c.b16 %v316, %v312
    %v401 = vpack.c.b16 %v317, %v313
    %v402 = vpack.c.b16 %v322, %v318
    %v403 = vpack.c.b16 %v323, %v319
    %v404 = vpack.c.b16 %v324, %v320
    %v405 = vpack.c.b16 %v325, %v321
    %v406 = vpack.c.b16 %v330, %v326
    %v407 = vpack.c.b16 %v331, %v327
    %v408 = vpack.c.b16 %v332, %v328
    %v409 = vpack.c.b16 %v333, %v329
    %v410 = vpack.c.b16 %v338, %v334
    %v411 = vpack.c.b16 %v339, %v335
    %v412 = vpack.c.b16 %v340, %v336
    %v413 = vpack.c.b16 %v341, %v337
    %v414 = vpack.c.b16 %v346, %v342
    %v415 = vpack.c.b16 %v347, %v343
    %v416 = vpack.c.b16 %v348, %v344
    %v417 = vpack.c.b16 %v349, %v345
    %v418 = vpack.c.b16 %v354, %v350
    %v419 = vpack.c.b16 %v355, %v351
    %v420 = vpack.c.b16 %v356, %v352
    %v421 = vpack.c.b16 %v357, %v353
    %486 = vmatprep.subr.bf16.mxu0 %v359
    %487 = vmatpush1.bf16.msra.mxu0 %v358
    %488 = vmatprep.subr.bf16.mxu0 %v363
    %489 = vmatpush1.bf16.msra.mxu0 %v362
    %490 = vmatprep.subr.bf16.mxu0 %v367
    %491 = vmatpush1.bf16.msra.mxu0 %v366
    %492 = vmatprep.subr.bf16.mxu0 %v371
    %493 = vmatpush1.bf16.msra.mxu0 %v370
    %494 = vmatprep.subr.bf16.mxu0 %v375
    %495 = vmatpush1.bf16.msra.mxu0 %v374
    %496 = vmatprep.subr.bf16.mxu0 %v379
    %497 = vmatpush1.bf16.msra.mxu0 %v378
    %498 = vmatprep.subr.bf16.mxu0 %v383
    %499 = vmatpush1.bf16.msra.mxu0 %v382
    %500 = vmatprep.subr.bf16.mxu0 %v387
    %501 = vmatpush1.bf16.msra.mxu0 %v386
    %502 = vmatprep.subr.bf16.mxu0 %v391
    %503 = vmatpush1.bf16.msra.mxu0 %v390
    %504 = vmatprep.subr.bf16.mxu0 %v395
    %505 = vmatpush1.bf16.msra.mxu0 %v394
    %506 = vmatprep.subr.bf16.mxu0 %v399
    %507 = vmatpush1.bf16.msra.mxu0 %v398
    %508 = vmatprep.subr.bf16.mxu0 %v403
    %509 = vmatpush1.bf16.msra.mxu0 %v402
    %510 = vmatprep.subr.bf16.mxu0 %v407
    %511 = vmatpush1.bf16.msra.mxu0 %v406
    %512 = vmatprep.subr.bf16.mxu0 %v411
    %513 = vmatpush1.bf16.msra.mxu0 %v410
    %514 = vmatprep.subr.bf16.mxu0 %v415
    %515 = vmatpush1.bf16.msra.mxu0 %v414
    %516 = vmatprep.subr.bf16.mxu0 %v419
    %517 = vmatpush1.bf16.msra.mxu0 %v418
    %518 = vmatprep.mubr.bf16.mxu0 %v163
    %519 = vmatmul.mubr.bf16.gmra.mrb[0].mxu0 %v162
    %v520 = vpop.f32.mrb[0].mxu0
    %v521 = vadd.f32 0.0, %v520
    %v522 = vpop.f32.mrb[0].mxu0
    %v523 = vadd.f32 0.0, %v522
    %v524 = vpop.f32.mrb[0].mxu0
    %v525 = vpop.f32.mrb[0].mxu0
    %526 = vdwg.mxu0
    %527 = vmatprep.subr.bf16.mxu0 %v361
    %528 = vmatpush1.bf16.msra.mxu0 %v360
    %529 = vmatprep.subr.bf16.mxu0 %v365
    %530 = vmatpush1.bf16.msra.mxu0 %v364
    %531 = vmatprep.subr.bf16.mxu0 %v369
    %532 = vmatpush1.bf16.msra.mxu0 %v368
    %533 = vmatprep.subr.bf16.mxu0 %v373
    %534 = vmatpush1.bf16.msra.mxu0 %v372
    %535 = vmatprep.subr.bf16.mxu0 %v377
    %536 = vmatpush1.bf16.msra.mxu0 %v376
    %537 = vmatprep.subr.bf16.mxu0 %v381
    %538 = vmatpush1.bf16.msra.mxu0 %v380
    %539 = vmatprep.subr.bf16.mxu0 %v385
    %540 = vmatpush1.bf16.msra.mxu0 %v384
    %541 = vmatprep.subr.bf16.mxu0 %v389
    %542 = vmatpush1.bf16.msra.mxu0 %v388
    %543 = vmatprep.subr.bf16.mxu0 %v393
    %544 = vmatpush1.bf16.msra.mxu0 %v392
    %545 = vmatprep.subr.bf16.mxu0 %v397
    %546 = vmatpush1.bf16.msra.mxu0 %v396
    %547 = vmatprep.subr.bf16.mxu0 %v401
    %548 = vmatpush1.bf16.msra.mxu0 %v400
    %549 = vmatprep.subr.bf16.mxu0 %v405
    %550 = vmatpush1.bf16.msra.mxu0 %v404
    %551 = vmatprep.subr.bf16.mxu0 %v409
    %552 = vmatpush1.bf16.msra.mxu0 %v408
    %553 = vmatprep.subr.bf16.mxu0 %v413
    %554 = vmatpush1.bf16.msra.mxu0 %v412
    %555 = vmatprep.subr.bf16.mxu0 %v417
    %556 = vmatpush1.bf16.msra.mxu0 %v416
    %557 = vmatprep.subr.bf16.mxu0 %v421
    %558 = vmatpush1.bf16.msra.mxu0 %v420
    %559 = vmatprep.mubr.bf16.mxu0 %v163
    %560 = vmatmul.mubr.bf16.gmra.mrb[0].mxu0 %v162
    %v561 = vpop.f32.mrb[0].mxu0
    %v562 = vadd.f32 0.0, %v561
    %v563 = vpop.f32.mrb[0].mxu0
    %v564 = vadd.f32 0.0, %v563
    %v565 = vpop.f32.mrb[0].mxu0
    %v566 = vpop.f32.mrb[0].mxu0
    %567 = vdwg.mxu0
    %v568 = vrot.slane %v521, 4
    %v569 = vadd.f32 %v521, %v568
    %v570 = vrot.slane %v569, 2
    %v571 = vadd.f32 %v569, %v570
    %v572 = vrot.slane %v571, 1
    %v573 = vadd.f32 %v571, %v572
    %v574 = vrot.slane %v523, 4
    %v575 = vadd.f32 %v523, %v574
    %v576 = vrot.slane %v575, 2
    %v577 = vadd.f32 %v575, %v576
    %v578 = vrot.slane %v577, 1
    %v579 = vadd.f32 %v577, %v578
    %v580 = vrot.slane %v562, 4
    %v581 = vadd.f32 %v562, %v580
    %v582 = vrot.slane %v581, 2
    %v583 = vadd.f32 %v581, %v582
    %v584 = vrot.slane %v583, 1
    %v585 = vadd.f32 %v583, %v584
    %v586 = vrot.slane %v564, 4
    %v587 = vadd.f32 %v564, %v586
    %v588 = vrot.slane %v587, 2
    %v589 = vadd.f32 %v587, %v588
    %v590 = vrot.slane %v589, 1
    %v591 = vadd.f32 %v589, %v590
    %v592 = vmul.f32 %v573, 0.125
    %v593 = vmul.f32 %v579, 0.125
    %v594 = vmul.f32 %v585, 0.125
    %v595 = vmul.f32 %v591, 0.125
    %v596 = vmul.f32 %v521, %v521
    %v597 = vmul.f32 %v523, %v523
    %v598 = vmul.f32 %v562, %v562
    %v599 = vmul.f32 %v564, %v564
    %v600 = vrot.slane %v596, 4
    %v601 = vadd.f32 %v596, %v600
    %v602 = vrot.slane %v601, 2
    %v603 = vadd.f32 %v601, %v602
    %v604 = vrot.slane %v603, 1
    %v605 = vadd.f32 %v603, %v604
    %v606 = vrot.slane %v597, 4
    %v607 = vadd.f32 %v597, %v606
    %v608 = vrot.slane %v607, 2
    %v609 = vadd.f32 %v607, %v608
    %v610 = vrot.slane %v609, 1
    %v611 = vadd.f32 %v609, %v610
    %v612 = vrot.slane %v598, 4
    %v613 = vadd.f32 %v598, %v612
    %v614 = vrot.slane %v613, 2
    %v615 = vadd.f32 %v613, %v614
    %v616 = vrot.slane %v615, 1
    %v617 = vadd.f32 %v615, %v616
    %v618 = vrot.slane %v599, 4
    %v619 = vadd.f32 %v599, %v618
    %v620 = vrot.slane %v619, 2
    %v621 = vadd.f32 %v619, %v620
    %v622 = vrot.slane %v621, 1
    %v623 = vadd.f32 %v621, %v622
    %v624 = vmul.f32 %v605, 0.125
    %v625 = vmul.f32 %v611, 0.125
    %v626 = vmul.f32 %v617, 0.125
    %v627 = vmul.f32 %v623, 0.125
    %v628 = vmul.f32 %v592, %v592
    %v629 = vmul.f32 %v593, %v593
    %v630 = vmul.f32 %v594, %v594
    %v631 = vmul.f32 %v595, %v595
    %v632 = vsub.f32 %v624, %v628
    %v633 = vsub.f32 %v625, %v629
    %v634 = vsub.f32 %v626, %v630
    %v635 = vsub.f32 %v627, %v631
    %v636 = vmax.f32 %v632, 0.0
    %v637 = vmax.f32 %v633, 0.0
    %v638 = vmax.f32 %v634, 0.0
    %v639 = vmax.f32 %v635, 0.0
    %v640 = vadd.f32 %v636, 1e-05
    %v641 = vadd.f32 %v637, 1e-05
    %v642 = vadd.f32 %v638, 1e-05
    %v643 = vadd.f32 %v639, 1e-05
    %v644 = vrsqrt.pop %v640
    %v645 = vrsqrt.pop %v641
    %v646 = vrsqrt.pop %v642
    %v647 = vrsqrt.pop %v643
    %v648 = vld [vmem:[#allocation7] ss:$2 sm:$0xf]
    %v650 = vlaneseq
    %v651 = vshrl.u32 %v650, 7
    %v652 = vsub.s32 0, %v651
    %v653 = vrot.slane %v648, %v652
    %v654 = vlaneseq
    %v655 = vshrl.u32 %v654, 7
    %v656 = vsub.s32 1, %v655
    %v657 = vrot.slane %v648, %v656
    %v658 = vlaneseq
    %v659 = vshrl.u32 %v658, 7
    %v660 = vsub.s32 2, %v659
    %v661 = vrot.slane %v648, %v660
    %v662 = vlaneseq
    %v663 = vshrl.u32 %v662, 7
    %v664 = vsub.s32 3, %v663
    %v665 = vrot.slane %v648, %v664
    %v670 = vmul.f32 %v644, %v653
    %v671 = vmul.f32 %v645, %v657
    %v672 = vmul.f32 %v646, %v661
    %v673 = vmul.f32 %v647, %v665
    %s674 = scalar_lea.vmem [#allocation7], 1
    %v675 = vld [vmem:[%s674] ss:$2 sm:$0xf]
    %v676 = vmul.f32 %v592, %v670
    %v677 = vmul.f32 %v593, %v671
    %v678 = vmul.f32 %v594, %v672
    %v679 = vmul.f32 %v595, %v673
    %v684 = vcombine.low %v676, %v677
    %v685 = vcombine.low %v678, %v679
    %v687 = vunpack.c.l.s4 1966171168
    %v688 = vunpack.c.0.s8 %v687
    %v689 = vlaneseq
    %v690 = vshrl.u32 %v689, 7
    %v691 = vsub.s32 %v688, %v690
    %v692 = vrot.slane %v684, %v691
    %v694 = vunpack.c.l.s4 1966171168
    %v695 = vunpack.c.0.s8 %v694
    %v696 = vlaneseq
    %v697 = vshrl.u32 %v696, 7
    %v698 = vsub.s32 %v695, %v697
    %v699 = vrot.slane %v685, %v698
    %v700 = vcombine.low %v692, %v699
    %v702 = vunpack.c.l.s4 1966171168
    %v703 = vunpack.c.0.s8 %v702
    %v704 = vlaneseq
    %v705 = vshrl.u32 %v704, 7
    %v706 = vsub.s32 %v703, %v705
    %v707 = vrot.slane %v700, %v706
    %v709 = vsub.f32 %v675, %v707
    %v710 = vlaneseq
    %v711 = vshrl.u32 %v710, 7
    %v712 = vsub.s32 0, %v711
    %v713 = vrot.slane %v670, %v712
    %v714 = vlaneseq
    %v715 = vshrl.u32 %v714, 7
    %v716 = vsub.s32 0, %v715
    %v717 = vrot.slane %v671, %v716
    %v718 = vlaneseq
    %v719 = vshrl.u32 %v718, 7
    %v720 = vsub.s32 0, %v719
    %v721 = vrot.slane %v672, %v720
    %v722 = vlaneseq
    %v723 = vshrl.u32 %v722, 7
    %v724 = vsub.s32 0, %v723
    %v725 = vrot.slane %v673, %v724
    %v726 = vmul.f32 %v521, %v713
    %v727 = vmul.f32 %v523, %v717
    %v728 = vmul.f32 %v562, %v721
    %v729 = vmul.f32 %v564, %v725
    %v731 = vlaneseq
    %v732 = vshrl.u32 %v731, 7
    %v733 = vsub.s32 0, %v732
    %v734 = vrot.slane %v709, %v733
    %v735 = vlaneseq
    %v736 = vshrl.u32 %v735, 7
    %v737 = vsub.s32 1, %v736
    %v738 = vrot.slane %v709, %v737
    %v739 = vlaneseq
    %v740 = vshrl.u32 %v739, 7
    %v741 = vsub.s32 2, %v740
    %v742 = vrot.slane %v709, %v741
    %v743 = vlaneseq
    %v744 = vshrl.u32 %v743, 7
    %v745 = vsub.s32 3, %v744
    %v746 = vrot.slane %v709, %v745
    %v751 = vadd.f32 %v726, %v734
    %v752 = vadd.f32 %v727, %v738
    %v753 = vadd.f32 %v728, %v742
    %v754 = vadd.f32 %v729, %v746
    %v755 = vmax.f32 %v751, 0.0
    %v756 = vmax.f32 %v752, 0.0
    %v757 = vmax.f32 %v753, 0.0
    %v758 = vmax.f32 %v754, 0.0
    %v759 = vld [vmem:[#allocation10] sm:$0xff]
    %v760 = vpack.c.bf16 %v755, %v755
    %v761 = vpack.c.bf16 %v756, %v756
    %v762 = vpack.c.bf16 %v757, %v757
    %v763 = vpack.c.bf16 %v758, %v758
    %v764 = vld [vmem:[#allocation9] sm:$0xf]
    %v765 = vld [vmem:[#allocation9 + $0x4] sm:$0xf]
    %v766 = vld [vmem:[#allocation9 + $0x8] sm:$0xf]
    %v767 = vld [vmem:[#allocation9 + $0xc] sm:$0xf]
    %v768 = vld [vmem:[#allocation9 + $0x10] sm:$0xf]
    %v769 = vld [vmem:[#allocation9 + $0x14] sm:$0xf]
    %v770 = vld [vmem:[#allocation9 + $0x18] sm:$0xf]
    %v771 = vld [vmem:[#allocation9 + $0x1c] sm:$0xf]
    %v772 = vld [vmem:[#allocation9 + $0x20] sm:$0xf]
    %v773 = vld [vmem:[#allocation9 + $0x24] sm:$0xf]
    %v774 = vld [vmem:[#allocation9 + $0x28] sm:$0xf]
    %v775 = vld [vmem:[#allocation9 + $0x2c] sm:$0xf]
    %v776 = vld [vmem:[#allocation9 + $0x30] sm:$0xf]
    %v777 = vld [vmem:[#allocation9 + $0x34] sm:$0xf]
    %v778 = vld [vmem:[#allocation9 + $0x38] sm:$0xf]
    %v779 = vld [vmem:[#allocation9 + $0x3c] sm:$0xf]
    %v780 = vld [vmem:[#allocation9 + $0x40] sm:$0xf]
    %v781 = vld [vmem:[#allocation9 + $0x44] sm:$0xf]
    %v782 = vld [vmem:[#allocation9 + $0x48] sm:$0xf]
    %v783 = vld [vmem:[#allocation9 + $0x4c] sm:$0xf]
    %v784 = vld [vmem:[#allocation9 + $0x50] sm:$0xf]
    %v785 = vld [vmem:[#allocation9 + $0x54] sm:$0xf]
    %v786 = vld [vmem:[#allocation9 + $0x58] sm:$0xf]
    %v787 = vld [vmem:[#allocation9 + $0x5c] sm:$0xf]
    %v788 = vld [vmem:[#allocation9 + $0x60] sm:$0xf]
    %v789 = vld [vmem:[#allocation9 + $0x64] sm:$0xf]
    %v790 = vld [vmem:[#allocation9 + $0x68] sm:$0xf]
    %v791 = vld [vmem:[#allocation9 + $0x6c] sm:$0xf]
    %v792 = vld [vmem:[#allocation9 + $0x70] sm:$0xf]
    %v793 = vld [vmem:[#allocation9 + $0x74] sm:$0xf]
    %v794 = vld [vmem:[#allocation9 + $0x78] sm:$0xf]
    %v795 = vld [vmem:[#allocation9 + $0x7c] sm:$0xf]
    %v796 = vld [vmem:[#allocation9 + $0x80] sm:$0xf]
    %v797 = vld [vmem:[#allocation9 + $0x84] sm:$0xf]
    %v798 = vld [vmem:[#allocation9 + $0x88] sm:$0xf]
    %v799 = vld [vmem:[#allocation9 + $0x8c] sm:$0xf]
    %v800 = vld [vmem:[#allocation9 + $0x90] sm:$0xf]
    %v801 = vld [vmem:[#allocation9 + $0x94] sm:$0xf]
    %v802 = vld [vmem:[#allocation9 + $0x98] sm:$0xf]
    %v803 = vld [vmem:[#allocation9 + $0x9c] sm:$0xf]
    %v804 = vld [vmem:[#allocation9 + $0xa0] sm:$0xf]
    %v805 = vld [vmem:[#allocation9 + $0xa4] sm:$0xf]
    %v806 = vld [vmem:[#allocation9 + $0xa8] sm:$0xf]
    %v807 = vld [vmem:[#allocation9 + $0xac] sm:$0xf]
    %v808 = vld [vmem:[#allocation9 + $0xb0] sm:$0xf]
    %v809 = vld [vmem:[#allocation9 + $0xb4] sm:$0xf]
    %v810 = vld [vmem:[#allocation9 + $0xb8] sm:$0xf]
    %v811 = vld [vmem:[#allocation9 + $0xbc] sm:$0xf]
    %v812 = vld [vmem:[#allocation9 + $0xc0] sm:$0xf]
    %v813 = vld [vmem:[#allocation9 + $0xc4] sm:$0xf]
    %v814 = vld [vmem:[#allocation9 + $0xc8] sm:$0xf]
    %v815 = vld [vmem:[#allocation9 + $0xcc] sm:$0xf]
    %v816 = vld [vmem:[#allocation9 + $0xd0] sm:$0xf]
    %v817 = vld [vmem:[#allocation9 + $0xd4] sm:$0xf]
    %v818 = vld [vmem:[#allocation9 + $0xd8] sm:$0xf]
    %v819 = vld [vmem:[#allocation9 + $0xdc] sm:$0xf]
    %v820 = vld [vmem:[#allocation9 + $0xe0] sm:$0xf]
    %v821 = vld [vmem:[#allocation9 + $0xe4] sm:$0xf]
    %v822 = vld [vmem:[#allocation9 + $0xe8] sm:$0xf]
    %v823 = vld [vmem:[#allocation9 + $0xec] sm:$0xf]
    %v824 = vld [vmem:[#allocation9 + $0xf0] sm:$0xf]
    %v825 = vld [vmem:[#allocation9 + $0xf4] sm:$0xf]
    %v826 = vld [vmem:[#allocation9 + $0xf8] sm:$0xf]
    %v827 = vld [vmem:[#allocation9 + $0xfc] sm:$0xf]
    %v892 = vunpack.c.l.b16 %v764
    %v893 = vunpack.c.l.b16 %v765
    %v894 = vunpack.c.l.b16 %v766
    %v895 = vunpack.c.l.b16 %v767
    %v896 = vunpack.c.l.b16 %v768
    %v897 = vunpack.c.l.b16 %v769
    %v898 = vunpack.c.l.b16 %v770
    %v899 = vunpack.c.l.b16 %v771
    %v900 = vunpack.c.l.b16 %v772
    %v901 = vunpack.c.l.b16 %v773
    %v902 = vunpack.c.l.b16 %v774
    %v903 = vunpack.c.l.b16 %v775
    %v904 = vunpack.c.l.b16 %v776
    %v905 = vunpack.c.l.b16 %v777
    %v906 = vunpack.c.l.b16 %v778
    %v907 = vunpack.c.l.b16 %v779
    %v908 = vunpack.c.l.b16 %v780
    %v909 = vunpack.c.l.b16 %v781
    %v910 = vunpack.c.l.b16 %v782
    %v911 = vunpack.c.l.b16 %v783
    %v912 = vunpack.c.l.b16 %v784
    %v913 = vunpack.c.l.b16 %v785
    %v914 = vunpack.c.l.b16 %v786
    %v915 = vunpack.c.l.b16 %v787
    %v916 = vunpack.c.l.b16 %v788
    %v917 = vunpack.c.l.b16 %v789
    %v918 = vunpack.c.l.b16 %v790
    %v919 = vunpack.c.l.b16 %v791
    %v920 = vunpack.c.l.b16 %v792
    %v921 = vunpack.c.l.b16 %v793
    %v922 = vunpack.c.l.b16 %v794
    %v923 = vunpack.c.l.b16 %v795
    %v924 = vunpack.c.l.b16 %v796
    %v925 = vunpack.c.l.b16 %v797
    %v926 = vunpack.c.l.b16 %v798
    %v927 = vunpack.c.l.b16 %v799
    %v928 = vunpack.c.l.b16 %v800
    %v929 = vunpack.c.l.b16 %v801
    %v930 = vunpack.c.l.b16 %v802
    %v931 = vunpack.c.l.b16 %v803
    %v932 = vunpack.c.l.b16 %v804
    %v933 = vunpack.c.l.b16 %v805
    %v934 = vunpack.c.l.b16 %v806
    %v935 = vunpack.c.l.b16 %v807
    %v936 = vunpack.c.l.b16 %v808
    %v937 = vunpack.c.l.b16 %v809
    %v938 = vunpack.c.l.b16 %v810
    %v939 = vunpack.c.l.b16 %v811
    %v940 = vunpack.c.l.b16 %v812
    %v941 = vunpack.c.l.b16 %v813
    %v942 = vunpack.c.l.b16 %v814
    %v943 = vunpack.c.l.b16 %v815
    %v944 = vunpack.c.l.b16 %v816
    %v945 = vunpack.c.l.b16 %v817
    %v946 = vunpack.c.l.b16 %v818
    %v947 = vunpack.c.l.b16 %v819
    %v948 = vunpack.c.l.b16 %v820
    %v949 = vunpack.c.l.b16 %v821
    %v950 = vunpack.c.l.b16 %v822
    %v951 = vunpack.c.l.b16 %v823
    %v952 = vunpack.c.l.b16 %v824
    %v953 = vunpack.c.l.b16 %v825
    %v954 = vunpack.c.l.b16 %v826
    %v955 = vunpack.c.l.b16 %v827
    %v956 = vpack.c.b16 %v893, %v892
    %v957 = vpack.c.b16 %v895, %v894
    %v958 = vpack.c.b16 %v897, %v896
    %v959 = vpack.c.b16 %v899, %v898
    %v960 = vpack.c.b16 %v901, %v900
    %v961 = vpack.c.b16 %v903, %v902
    %v962 = vpack.c.b16 %v905, %v904
    %v963 = vpack.c.b16 %v907, %v906
    %v964 = vpack.c.b16 %v909, %v908
    %v965 = vpack.c.b16 %v911, %v910
    %v966 = vpack.c.b16 %v913, %v912
    %v967 = vpack.c.b16 %v915, %v914
    %v968 = vpack.c.b16 %v917, %v916
    %v969 = vpack.c.b16 %v919, %v918
    %v970 = vpack.c.b16 %v921, %v920
    %v971 = vpack.c.b16 %v923, %v922
    %v972 = vpack.c.b16 %v925, %v924
    %v973 = vpack.c.b16 %v927, %v926
    %v974 = vpack.c.b16 %v929, %v928
    %v975 = vpack.c.b16 %v931, %v930
    %v976 = vpack.c.b16 %v933, %v932
    %v977 = vpack.c.b16 %v935, %v934
    %v978 = vpack.c.b16 %v937, %v936
    %v979 = vpack.c.b16 %v939, %v938
    %v980 = vpack.c.b16 %v941, %v940
    %v981 = vpack.c.b16 %v943, %v942
    %v982 = vpack.c.b16 %v945, %v944
    %v983 = vpack.c.b16 %v947, %v946
    %v984 = vpack.c.b16 %v949, %v948
    %v985 = vpack.c.b16 %v951, %v950
    %v986 = vpack.c.b16 %v953, %v952
    %v987 = vpack.c.b16 %v955, %v954
    %1020 = vmatprep.subr.bf16.mxu0 0
    %1021 = vmatpush1.bf16.msra.mxu0 %v956
    %1022 = vmatprep.subr.bf16.mxu0 0
    %1023 = vmatpush1.bf16.msra.mxu0 %v957
    %1024 = vmatprep.subr.bf16.mxu0 0
    %1025 = vmatpush1.bf16.msra.mxu0 %v958
    %1026 = vmatprep.subr.bf16.mxu0 0
    %1027 = vmatpush1.bf16.msra.mxu0 %v959
    %1028 = vmatprep.subr.bf16.mxu0 0
    %1029 = vmatpush1.bf16.msra.mxu0 %v960
    %1030 = vmatprep.subr.bf16.mxu0 0
    %1031 = vmatpush1.bf16.msra.mxu0 %v961
    %1032 = vmatprep.subr.bf16.mxu0 0
    %1033 = vmatpush1.bf16.msra.mxu0 %v962
    %1034 = vmatprep.subr.bf16.mxu0 0
    %1035 = vmatpush1.bf16.msra.mxu0 %v963
    %1036 = vmatprep.subr.bf16.mxu0 0
    %1037 = vmatpush1.bf16.msra.mxu0 %v964
    %1038 = vmatprep.subr.bf16.mxu0 0
    %1039 = vmatpush1.bf16.msra.mxu0 %v965
    %1040 = vmatprep.subr.bf16.mxu0 0
    %1041 = vmatpush1.bf16.msra.mxu0 %v966
    %1042 = vmatprep.subr.bf16.mxu0 0
    %1043 = vmatpush1.bf16.msra.mxu0 %v967
    %1044 = vmatprep.subr.bf16.mxu0 0
    %1045 = vmatpush1.bf16.msra.mxu0 %v968
    %1046 = vmatprep.subr.bf16.mxu0 0
    %1047 = vmatpush1.bf16.msra.mxu0 %v969
    %1048 = vmatprep.subr.bf16.mxu0 0
    %1049 = vmatpush1.bf16.msra.mxu0 %v970
    %1050 = vmatprep.subr.bf16.mxu0 0
    %1051 = vmatpush1.bf16.msra.mxu0 %v971
    %1052 = vmatprep.mubr.bf16.mxu0 %v761
    %1053 = vmatmul.mubr.bf16.gmra.mrb[0].mxu0 %v760
    %v1054 = vpop.f32.mrb[0].mxu0
    %v1055 = vadd.f32 0.0, %v1054
    %v1056 = vpop.f32.mrb[0].mxu0
    %v1057 = vpop.f32.mrb[0].mxu0
    %v1058 = vpop.f32.mrb[0].mxu0
    %1059 = vdwg.mxu0
    %1060 = vmatprep.subr.bf16.mxu0 0
    %1061 = vmatpush1.bf16.msra.mxu0 %v972
    %1062 = vmatprep.subr.bf16.mxu0 0
    %1063 = vmatpush1.bf16.msra.mxu0 %v973
    %1064 = vmatprep.subr.bf16.mxu0 0
    %1065 = vmatpush1.bf16.msra.mxu0 %v974
    %1066 = vmatprep.subr.bf16.mxu0 0
    %1067 = vmatpush1.bf16.msra.mxu0 %v975
    %1068 = vmatprep.subr.bf16.mxu0 0
    %1069 = vmatpush1.bf16.msra.mxu0 %v976
    %1070 = vmatprep.subr.bf16.mxu0 0
    %1071 = vmatpush1.bf16.msra.mxu0 %v977
    %1072 = vmatprep.subr.bf16.mxu0 0
    %1073 = vmatpush1.bf16.msra.mxu0 %v978
    %1074 = vmatprep.subr.bf16.mxu0 0
    %1075 = vmatpush1.bf16.msra.mxu0 %v979
    %1076 = vmatprep.subr.bf16.mxu0 0
    %1077 = vmatpush1.bf16.msra.mxu0 %v980
    %1078 = vmatprep.subr.bf16.mxu0 0
    %1079 = vmatpush1.bf16.msra.mxu0 %v981
    %1080 = vmatprep.subr.bf16.mxu0 0
    %1081 = vmatpush1.bf16.msra.mxu0 %v982
    %1082 = vmatprep.subr.bf16.mxu0 0
    %1083 = vmatpush1.bf16.msra.mxu0 %v983
    %1084 = vmatprep.subr.bf16.mxu0 0
    %1085 = vmatpush1.bf16.msra.mxu0 %v984
    %1086 = vmatprep.subr.bf16.mxu0 0
    %1087 = vmatpush1.bf16.msra.mxu0 %v985
    %1088 = vmatprep.subr.bf16.mxu0 0
    %1089 = vmatpush1.bf16.msra.mxu0 %v986
    %1090 = vmatprep.subr.bf16.mxu0 0
    %1091 = vmatpush1.bf16.msra.mxu0 %v987
    %1092 = vmatprep.mubr.bf16.mxu0 %v763
    %1093 = vmatmul.mubr.bf16.gmra.mrb[0].mxu0 %v762
    %v1094 = vpop.f32.mrb[0].mxu0
    %v1095 = vadd.f32 %v1055, %v1094
    %v1096 = vpop.f32.mrb[0].mxu0
    %v1097 = vpop.f32.mrb[0].mxu0
    %v1098 = vpop.f32.mrb[0].mxu0
    %1099 = vdwg.mxu0
    %v1100 = vadd.f32 %v759, %v1095
    %1101 = vst [vmem:[#allocation10] sm:$0xff] %v1100
    // Predicated region
    $region34: #{tpu_custom_call.1} parent=1 // pred_check
      %p1102 = pneg %p74
    $region35: #{tpu_custom_call.1} parent=1 // pred_check_branch
      %1104 = sbr.rel (%p1102) target = $region37
    $region36: #{tpu_custom_call.1} parent=1 // pred_region
      %v1105 = vld [vmem:[#allocation10] sm:$0xff]
      %v1106 = vmul.f32 %v1105, %v1105
      %1107 = vadd.xlane.f32.xlu0 %v1106
      %v1108 = vpop.xlane.xlu0 %1107
      %v1109 = vmax.f32 %v1108, 1e-24
      %v1110 = vrsqrt.pop %v1109
      %v1111 = vmul.f32 %v1105, %v1110
      %1112 = vst [vmem:[#allocation10] sm:$0xff] %v1111
    $region37: #{tpu_custom_call.1} parent=1 // pred_fallthru
      _
    // Predicated region
    $region38: #{tpu_custom_call.1} parent=1 // pred_check
      _
    $region39: #{tpu_custom_call.1} parent=1 // pred_check_branch
      %1114 = sbr.rel (0) target = $region41
    $region40: #{tpu_custom_call.1} parent=1 // pred_region
      %s1116 = ssub.s32 128, 128
      %1117 = vsyncadd [#allocation6], %s1116
      %s1119 = sshll.u32 [#allocation10], 4
      %s1120 = int_to_ptr.vmem [resolvable:$true] %s1119
      %1122 = dma.vmem_to_hbm [thread:$0]  %s1120, 128, %s4, [#allocation6]
    $region41: #{tpu_custom_call.1} parent=1 // pred_fallthru
      _
    // Predicated region
    $region42: #{tpu_custom_call.1} parent=1 // pred_check
      _
    $region43: #{tpu_custom_call.1} parent=1 // pred_check_branch
      %1124 = sbr.rel (0) target = $region45
    $region44: #{tpu_custom_call.1} parent=1 // pred_region
      %1125 = dma.done [#allocation6], 128
    $region45: #{tpu_custom_call.1} parent=1 // pred_fallthru
      _
    %1126 = vsyncpa [#allocation5], 1
    %1127 = vsyncpa [#allocation8], 1
    %1128 = vsyncpa [#allocation6], 1
  %1129 = vsyncmov [#allocation3]
  %s1130 = vpop.sfrf %1129
  %p1131 = scmp.eq.s32.totalorder %s1130, 0
  %p1132 = pneg %p1131
  %1134 = shalt.err (%p1132)

</llo_original>
